<compile_context>
chip_gen: v6e
topology: v6e:2x2x1
jax: 0.10.0
libtpu: 0.0.40
codegen_flags: <defaults>
</compile_context>

<pallas_src>
import math
import functools

import jax
import jax.numpy as jnp
from jax.experimental import pallas as pl
from jax.experimental.pallas import tpu as pltpu

KEY_DIM = 1      # matches `key_dim = 1` in the module
VALUE_DIM = 1    # matches `value_dim = 1`


def _attn_kernel(w_ref, b_ref, x_ref, o_ref, *, inv_scale):
    """One block of B batch elements per grid step.

    x_ref: (B, C, H, W) VMEM block of the input images.
    w_ref: (3, C) SMEM stacked 1x1-conv weights (rows: q, k, v).
    b_ref: (3,)  SMEM stacked biases (q, k, v).
    o_ref: (B, H, W) output block (channel dim of size 1 added in the wrapper).
    """
    B, C, H, W = x_ref.shape
    x = x_ref[...].astype(jnp.float32)                 # (B, C, H, W)

    # 1x1 convolutions == per-pixel channel contraction (+ bias).  C is a
    # small compile-time constant; each iteration shares one x[:, c] load
    # across the three projections (3*C VPU multiply-adds total).
    q = jnp.full((B, H, W), b_ref[0], jnp.float32)
    k = jnp.full((B, H, W), b_ref[1], jnp.float32)
    v = jnp.full((B, H, W), b_ref[2], jnp.float32)
    for c in range(C):                                  # static unroll, small C
        xc = x[:, c]                                    # (B, H, W)
        q = q + w_ref[0, c] * xc
        k = k + w_ref[1, c] * xc
        v = v + w_ref[2, c] * xc

    # Scores: batched Q @ K^T over the trailing spatial dims -> (B, H, H).
    s = jax.lax.dot_general(q, k, (((2,), (2,)), ((0,), (0,))),
                            preferred_element_type=jnp.float32)
    if inv_scale != 1.0:        # key_dim == 1 -> scale factor is exactly 1.0
        s = s * inv_scale

    # Numerically-stable softmax with an exact divide (f32-faithful).
    m = jnp.max(s, axis=-1, keepdims=True)
    e = jnp.exp(s - m)
    p = e / jnp.sum(e, axis=-1, keepdims=True)

    # dropout: identity (see TODO above)
    o = jax.lax.dot_general(p, v, (((2,), (1,)), ((0,), (0,))),
                            preferred_element_type=jnp.float32)   # (B, H, W)
    o_ref[...] = o.astype(o_ref.dtype)


def self_attention_1x1(x, wq, bq, wk, bk, wv, bv, *, max_batch_block=64):
    """x: (N, C, H, W) float32 -> (N, 1, H, W) float32."""
    N, C, H, W = x.shape
    inv_scale = 1.0 / math.sqrt(KEY_DIM)

    # Stack the three conv parameter sets so the kernel takes one weight ref.
    wqkv = jnp.stack([wq, wk, wv], axis=0)              # (3, C)
    bqkv = jnp.concatenate([bq, bk, bv], axis=0)        # (3,)

    # Batch blocking (robust for any N, no gcd collapse):
    #   - at least 2 grid steps when N > 1 (keeps both v7x TensorCores busy),
    #   - at most ~max_batch_block images per step (VMEM budget),
    #   - B chosen as cdiv(N, num_blocks) so padding is <= num_blocks-1 images.
    num_blocks = max(pl.cdiv(N, max_batch_block), 2 if N > 1 else 1)
    B = pl.cdiv(N, num_blocks)
    n_pad = num_blocks * B
    x_in = x
    if n_pad != N:
        # Zero-pad the trailing images; their (finite) outputs are sliced off.
        x_in = jnp.pad(x, ((0, n_pad - N), (0, 0), (0, 0), (0, 0)))

    kernel = functools.partial(_attn_kernel, inv_scale=inv_scale)
    smem_spec = pl.BlockSpec(memory_space=pltpu.MemorySpace.SMEM)
    x_spec = pl.BlockSpec((B, C, H, W), lambda n: (n, 0, 0, 0))
    out_spec = pl.BlockSpec((B, H, W), lambda n: (n, 0, 0))

    # Advisory cost hint: conv (2*3C MACs/pixel) + two H x H x W matmuls/image.
    cost = pl.CostEstimate(
        flops=int(2 * n_pad * H * W * (3 * C + 2 * H)),
        transcendentals=int(n_pad * H * H),              # exp in the softmax
        bytes_accessed=int(4 * (n_pad * C * H * W + n_pad * H * W + 3 * C + 3)),
    )

    out = pl.pallas_call(
        kernel,
        out_shape=jax.ShapeDtypeStruct((n_pad, H, W), x.dtype),
        grid=(num_blocks,),
        in_specs=[smem_spec, smem_spec, x_spec],
        out_specs=out_spec,
        compiler_params=pltpu.CompilerParams(
            dimension_semantics=("parallel",),    # batch blocks are independent
            vmem_limit_bytes=32 * 1024 * 1024,    # headroom over v5e's 16 MiB default
        ),
        cost_estimate=cost,
    )(wqkv, bqkv, x_in)

    if n_pad != N:
        out = out[:N]
    return out.reshape(N, KEY_DIM, H, W)


def _ref_forward(x, wq, bq, wk, bk, wv, bv):
    """Pure-JAX reference of the PyTorch forward (dropout = identity)."""
    hi = jax.lax.Precision.HIGHEST
    q = jnp.einsum("nchw,c->nhw", x, wq, precision=hi) + bq[0]
    k = jnp.einsum("nchw,c->nhw", x, wk, precision=hi) + bk[0]
    v = jnp.einsum("nchw,c->nhw", x, wv, precision=hi) + bv[0]
    s = jnp.einsum("nhw,ngw->nhg", q, k, precision=hi) / math.sqrt(KEY_DIM)
    p = jax.nn.softmax(s, axis=-1)
    o = jnp.einsum("nhg,ngw->nhw", p, v, precision=hi)
    return o[:, None]                                   # (N, 1, H, W)


if __name__ == "__main__":
    key = jax.random.PRNGKey(0)
    N, C, H, W = 2, 4, 16, 16                           # small shapes, consistent w/ module

    kx, kq, kk, kv, kb = jax.random.split(key, 5)
    x = jax.random.normal(kx, (N, C, H, W), jnp.float32)

    # deterministic 1x1-conv parameters (Conv2d(C, 1, 1) -> weight (C,), bias (1,))
    fan_scale = 1.0 / math.sqrt(C)
    wq = jax.random.normal(kq, (C,), jnp.float32) * fan_scale
    wk = jax.random.normal(kk, (C,), jnp.float32) * fan_scale
    wv = jax.random.normal(kv, (C,), jnp.float32) * fan_scale
    b = jax.random.normal(kb, (3,), jnp.float32) * 0.1
    bq, bk, bv = b[0:1], b[1:2], b[2:3]

    out = self_attention_1x1(x, wq, bq, wk, bk, wv, bv)
    jax.block_until_ready(out)

    ref = _ref_forward(x, wq, bq, wk, bk, wv, bv)
    assert out.shape == (N, KEY_DIM, H, W)
    # Exact-divide softmax + f32 matmuls: tight tolerance vs the f32 reference.
    assert jnp.allclose(out, ref, atol=1e-4, rtol=1e-4), "mismatch vs reference"

    print("KERNEL_OK")
</pallas_src>

<mosaic_0001>
module attributes {stable_mosaic.version = 11 : i64} {
  func.func @_attn_kernel(%arg0: i32, %arg1: memref<3x4xf32, #tpu.memory_space<smem>>, %arg2: memref<3xf32, #tpu.memory_space<smem>>, %arg3: memref<1x4x16x16xf32, #tpu.memory_space<vmem>>, %arg4: memref<1x16x16xf32, #tpu.memory_space<vmem>>) attributes {dimension_semantics = [#tpu.dimension_semantics<parallel>], iteration_bounds = array<i64: 2>, scalar_prefetch = 0 : i64, scratch_operands = 0 : i64, tpu.core_type = #tpu.core_type<tc>, window_params = [{transform_indices = @transform_0, window_bounds = array<i64: 3, 4>}, {transform_indices = @transform_1, window_bounds = array<i64: 3>}, {transform_indices = @transform_2, window_bounds = array<i64: 1, 4, 16, 16>}, {transform_indices = @transform_3, window_bounds = array<i64: 1, 16, 16>}]} {
    %c0 = arith.constant 0 : index
    %c0_0 = arith.constant 0 : index
    %c0_1 = arith.constant 0 : index
    %c0_2 = arith.constant 0 : index
    %0 = vector.load %arg3[%c0, %c0_0, %c0_1, %c0_2] : memref<1x4x16x16xf32, #tpu.memory_space<vmem>>, vector<1x4x16x16xf32>
    %c0_3 = arith.constant 0 : index
    %1 = memref.load %arg2[%c0_3] : memref<3xf32, #tpu.memory_space<smem>>
    %2 = vector.broadcast %1 : f32 to vector<1x16x16xf32>
    %c1 = arith.constant 1 : index
    %3 = memref.load %arg2[%c1] : memref<3xf32, #tpu.memory_space<smem>>
    %4 = vector.broadcast %3 : f32 to vector<1x16x16xf32>
    %c2 = arith.constant 2 : index
    %5 = memref.load %arg2[%c2] : memref<3xf32, #tpu.memory_space<smem>>
    %6 = vector.broadcast %5 : f32 to vector<1x16x16xf32>
    %7 = vector.extract_strided_slice %0 {offsets = [0, 0, 0, 0], sizes = [1, 1, 16, 16], strides = [1, 1, 1, 1]} : vector<1x4x16x16xf32> to vector<1x1x16x16xf32>
    %8 = vector.shape_cast %7 : vector<1x1x16x16xf32> to vector<1x16x16xf32>
    %c0_4 = arith.constant 0 : index
    %c0_5 = arith.constant 0 : index
    %9 = memref.load %arg1[%c0_4, %c0_5] : memref<3x4xf32, #tpu.memory_space<smem>>
    %10 = vector.broadcast %9 : f32 to vector<1x16x16xf32>
    %11 = arith.mulf %10, %8 : vector<1x16x16xf32>
    %12 = arith.addf %2, %11 : vector<1x16x16xf32>
    %c1_6 = arith.constant 1 : index
    %c0_7 = arith.constant 0 : index
    %13 = memref.load %arg1[%c1_6, %c0_7] : memref<3x4xf32, #tpu.memory_space<smem>>
    %14 = vector.broadcast %13 : f32 to vector<1x16x16xf32>
    %15 = arith.mulf %14, %8 : vector<1x16x16xf32>
    %16 = arith.addf %4, %15 : vector<1x16x16xf32>
    %c2_8 = arith.constant 2 : index
    %c0_9 = arith.constant 0 : index
    %17 = memref.load %arg1[%c2_8, %c0_9] : memref<3x4xf32, #tpu.memory_space<smem>>
    %18 = vector.broadcast %17 : f32 to vector<1x16x16xf32>
    %19 = arith.mulf %18, %8 : vector<1x16x16xf32>
    %20 = arith.addf %6, %19 : vector<1x16x16xf32>
    %21 = vector.extract_strided_slice %0 {offsets = [0, 1, 0, 0], sizes = [1, 1, 16, 16], strides = [1, 1, 1, 1]} : vector<1x4x16x16xf32> to vector<1x1x16x16xf32>
    %22 = vector.shape_cast %21 : vector<1x1x16x16xf32> to vector<1x16x16xf32>
    %c0_10 = arith.constant 0 : index
    %c1_11 = arith.constant 1 : index
    %23 = memref.load %arg1[%c0_10, %c1_11] : memref<3x4xf32, #tpu.memory_space<smem>>
    %24 = vector.broadcast %23 : f32 to vector<1x16x16xf32>
    %25 = arith.mulf %24, %22 : vector<1x16x16xf32>
    %26 = arith.addf %12, %25 : vector<1x16x16xf32>
    %c1_12 = arith.constant 1 : index
    %c1_13 = arith.constant 1 : index
    %27 = memref.load %arg1[%c1_12, %c1_13] : memref<3x4xf32, #tpu.memory_space<smem>>
    %28 = vector.broadcast %27 : f32 to vector<1x16x16xf32>
    %29 = arith.mulf %28, %22 : vector<1x16x16xf32>
    %30 = arith.addf %16, %29 : vector<1x16x16xf32>
    %c2_14 = arith.constant 2 : index
    %c1_15 = arith.constant 1 : index
    %31 = memref.load %arg1[%c2_14, %c1_15] : memref<3x4xf32, #tpu.memory_space<smem>>
    %32 = vector.broadcast %31 : f32 to vector<1x16x16xf32>
    %33 = arith.mulf %32, %22 : vector<1x16x16xf32>
    %34 = arith.addf %20, %33 : vector<1x16x16xf32>
    %35 = vector.extract_strided_slice %0 {offsets = [0, 2, 0, 0], sizes = [1, 1, 16, 16], strides = [1, 1, 1, 1]} : vector<1x4x16x16xf32> to vector<1x1x16x16xf32>
    %36 = vector.shape_cast %35 : vector<1x1x16x16xf32> to vector<1x16x16xf32>
    %c0_16 = arith.constant 0 : index
    %c2_17 = arith.constant 2 : index
    %37 = memref.load %arg1[%c0_16, %c2_17] : memref<3x4xf32, #tpu.memory_space<smem>>
    %38 = vector.broadcast %37 : f32 to vector<1x16x16xf32>
    %39 = arith.mulf %38, %36 : vector<1x16x16xf32>
    %40 = arith.addf %26, %39 : vector<1x16x16xf32>
    %c1_18 = arith.constant 1 : index
    %c2_19 = arith.constant 2 : index
    %41 = memref.load %arg1[%c1_18, %c2_19] : memref<3x4xf32, #tpu.memory_space<smem>>
    %42 = vector.broadcast %41 : f32 to vector<1x16x16xf32>
    %43 = arith.mulf %42, %36 : vector<1x16x16xf32>
    %44 = arith.addf %30, %43 : vector<1x16x16xf32>
    %c2_20 = arith.constant 2 : index
    %c2_21 = arith.constant 2 : index
    %45 = memref.load %arg1[%c2_20, %c2_21] : memref<3x4xf32, #tpu.memory_space<smem>>
    %46 = vector.broadcast %45 : f32 to vector<1x16x16xf32>
    %47 = arith.mulf %46, %36 : vector<1x16x16xf32>
    %48 = arith.addf %34, %47 : vector<1x16x16xf32>
    %49 = vector.extract_strided_slice %0 {offsets = [0, 3, 0, 0], sizes = [1, 1, 16, 16], strides = [1, 1, 1, 1]} : vector<1x4x16x16xf32> to vector<1x1x16x16xf32>
    %50 = vector.shape_cast %49 : vector<1x1x16x16xf32> to vector<1x16x16xf32>
    %c0_22 = arith.constant 0 : index
    %c3 = arith.constant 3 : index
    %51 = memref.load %arg1[%c0_22, %c3] : memref<3x4xf32, #tpu.memory_space<smem>>
    %52 = vector.broadcast %51 : f32 to vector<1x16x16xf32>
    %53 = arith.mulf %52, %50 : vector<1x16x16xf32>
    %54 = arith.addf %40, %53 : vector<1x16x16xf32>
    %c1_23 = arith.constant 1 : index
    %c3_24 = arith.constant 3 : index
    %55 = memref.load %arg1[%c1_23, %c3_24] : memref<3x4xf32, #tpu.memory_space<smem>>
    %56 = vector.broadcast %55 : f32 to vector<1x16x16xf32>
    %57 = arith.mulf %56, %50 : vector<1x16x16xf32>
    %58 = arith.addf %44, %57 : vector<1x16x16xf32>
    %c2_25 = arith.constant 2 : index
    %c3_26 = arith.constant 3 : index
    %59 = memref.load %arg1[%c2_25, %c3_26] : memref<3x4xf32, #tpu.memory_space<smem>>
    %60 = vector.broadcast %59 : f32 to vector<1x16x16xf32>
    %61 = arith.mulf %60, %50 : vector<1x16x16xf32>
    %62 = arith.addf %48, %61 : vector<1x16x16xf32>
    %cst = arith.constant dense<0.000000e+00> : vector<1x16x16xf32>
    %63 = tpu.matmul %54, %58, %cst {dimension_numbers = #tpu.dot_dimension_numbers<[2], [2], [1], [1], [0, 0, 0, 1, 1, 1], [0], [0]>} : vector<1x16x16xf32>, vector<1x16x16xf32>, vector<1x16x16xf32> -> vector<1x16x16xf32>
    %cst_27 = arith.constant dense<0xFF800000> : vector<1x16xf32>
    %64 = vector.multi_reduction <maximumf>, %63, %cst_27 [2] : vector<1x16x16xf32> to vector<1x16xf32>
    %65 = vector.shape_cast %64 : vector<1x16xf32> to vector<1x16x1xf32>
    %66 = vector.broadcast %65 : vector<1x16x1xf32> to vector<1x16x16xf32>
    %67 = arith.subf %63, %66 : vector<1x16x16xf32>
    %68 = math.exp %67 : vector<1x16x16xf32>
    %cst_28 = arith.constant dense<0.000000e+00> : vector<1x16xf32>
    %69 = vector.multi_reduction <add>, %68, %cst_28 [2] : vector<1x16x16xf32> to vector<1x16xf32>
    %70 = vector.shape_cast %69 : vector<1x16xf32> to vector<1x16x1xf32>
    %71 = vector.broadcast %70 : vector<1x16x1xf32> to vector<1x16x16xf32>
    %72 = arith.divf %68, %71 : vector<1x16x16xf32>
    %cst_29 = arith.constant dense<0.000000e+00> : vector<1x16x16xf32>
    %73 = tpu.matmul %72, %62, %cst_29 {dimension_numbers = #tpu.dot_dimension_numbers<[2], [1], [1], [2], [0, 0, 0, 1, 1, 2], [0], [0]>} : vector<1x16x16xf32>, vector<1x16x16xf32>, vector<1x16x16xf32> -> vector<1x16x16xf32>
    %c0_30 = arith.constant 0 : index
    %c0_31 = arith.constant 0 : index
    %c0_32 = arith.constant 0 : index
    %74 = vector.load %arg4[%c0_30, %c0_31, %c0_32] : memref<1x16x16xf32, #tpu.memory_space<vmem>>, vector<1x16x16xf32>
    tpu.vector_store %arg4[%c0_30, %c0_31, %c0_32], %73 {strides = array<i32>} : memref<1x16x16xf32, #tpu.memory_space<vmem>>, vector<1x16x16xf32>,
    return
  }
  func.func @transform_0(%arg0: i32) -> (i32, i32) {
    %c0_i32 = arith.constant 0 : i32
    %c0_i32_0 = arith.constant 0 : i32
    %c0_i32_1 = arith.constant 0 : i32
    return %c0_i32, %c0_i32_0 : i32, i32
  }
  func.func @transform_1(%arg0: i32) -> i32 {
    %c0_i32 = arith.constant 0 : i32
    %c0_i32_0 = arith.constant 0 : i32
    return %c0_i32 : i32
  }
  func.func @transform_2(%arg0: i32) -> (i32, i32, i32, i32) {
    %c0_i32 = arith.constant 0 : i32
    %c0_i32_0 = arith.constant 0 : i32
    %c0_i32_1 = arith.constant 0 : i32
    %c0_i32_2 = arith.constant 0 : i32
    return %arg0, %c0_i32, %c0_i32_0, %c0_i32_1 : i32, i32, i32, i32
  }
  func.func @transform_3(%arg0: i32) -> (i32, i32, i32) {
    %c0_i32 = arith.constant 0 : i32
    %c0_i32_0 = arith.constant 0 : i32
    %c0_i32_1 = arith.constant 0 : i32
    return %arg0, %c0_i32, %c0_i32_0 : i32, i32, i32
  }
}

</mosaic_0001>

<llo_original>
// kernel: tpu_custom_call.1
$region0: #{tpu_custom_call.1}
  #allocation0 [shape = 'u32[]', space=smem, size = 0x4, offset = 0x4, fixed_abs, tag = 'smem constant byte address 0x4 - core index']
  #allocation1 [shape = 'u32[144,128]{1,0:T(1,128)}', space=vmem, size = 0x12000, scoped, tag = 'internal scratch']
  %s0 = inlined_call_operand.hbm [shape: f32[3,4], index: 0, kind: input, shape index: {}]
  %s1 = inlined_call_operand.vmem [shape: f32[3], index: 1, kind: input, shape index: {}]
  %s2 = inlined_call_operand.hbm [shape: f32[2,4,16,16], index: 2, kind: input, shape index: {}]
  %s3 = inlined_call_operand.hbm [shape: f32[2,16,16], index: 3, kind: output, shape index: {}]
  %s4 = sld [smem:[#allocation0]]
  $region57: #{tpu_custom_call.1} parent=0
    _
  %s6 = ssub.s32 1, %s4
  %s7 = scalar_select 0, %s6, %s4
  $region1: #{tpu_custom_call.1} parent=0
    #allocation2 [shape = 'u8[2048]{0}', space=smem, size = 0x800, scoped, tag = 'input window, operand 0, single buffered']
    #allocation3 [shape = 's32[2]{0}', space=sflag, size = 0x8, scoped, tag = 'scoped memory for tpu_custom_call.1']
    #allocation4 [shape = 's32[2]{0}', space=sflag, size = 0x8, scoped, tag = 'scoped memory for tpu_custom_call.1']
    #allocation5 [shape = 's32[2]{0}', space=sflag, size = 0x8, scoped, tag = 'scoped memory for tpu_custom_call.1']
    #allocation6 [shape = 's32[2]{0}', space=sflag, size = 0x8, scoped, tag = 'scoped memory for tpu_custom_call.1']
    #allocation7 [shape = 'u8[512]{0}', space=smem, size = 0x200, scoped, tag = 'input window, operand 1, single buffered']
    #allocation8 [shape = 'u8[65536]{0}', space=vmem, size = 0x10000, scoped, tag = 'input window, operand 2']
    #allocation9 [shape = 'u8[16384]{0}', space=vmem, size = 0x4000, scoped, tag = 'output window, operand 0']
    %8 = vsyncpa [#allocation5], 0
    %9 = vsyncpa [#allocation6], 0
    %10 = vsyncpa [#allocation3], 0
    %s11 = scalar_lea.sflag [#allocation3], 1
    %12 = vsyncpa %s11, 0
    %13 = vsyncpa [#allocation4], 0
    %s14 = scalar_lea.sflag [#allocation4], 1
    %15 = vsyncpa %s14, 0
    loop: start=0, step=1, limit=4
    $region2: #{tpu_custom_call.1} parent=1 // loop_pre_header
      _
    $region3: #{tpu_custom_call.1} parent=1 // loop_header
      %s17 = sphi 0, %s21
      %p18 = scmp.ge.s32.totalorder %s17, 4
      %s25 = sphi 0, %s25
      %s27 = sphi 0, %s25
      %s28 = sphi 0, %s27
      %s42 = sphi 0, %s28
      %s46 = sphi 0, %s46
      %s48 = sphi 0, %s46
      %s49 = sphi 0, %s48
      %s63 = sphi 0, %s49
      %s69 = sphi 0, %s71
      %s72 = sphi 0, %s69
      %s73 = sphi 0, %s72
      %s89 = sphi 0, %s73
      %s95 = sphi 0, %s97
      %s98 = sphi 0, %s95
      %s99 = sphi 0, %s98
      %s115 = sphi 0, %s99
    $region4: #{tpu_custom_call.1} parent=1 // loop_header_branch
      %20 = sbr.rel (%p18) target = $region8
    $region5: #{tpu_custom_call.1} parent=1 // loop_body
      %s22 = ssub.s32 %s17, 1
      %s23 = ssub.s32 %s17, 2
      %s24 = sadd.s32 %s17, 1
      %s26 = sadd.s32 %s25, 1
      %p29 = scmp.eq.s32.totalorder %s17, 1
      %p30 = scmp.ne.s32.totalorder %s25, %s27
      %p31 = scmp.eq.s32.totalorder %s17, 0
      %p32 = por %p30, %p31
      %p33 = scmp.ne.s32.totalorder %s25, %s27
      %p34 = scmp.eq.s32.totalorder %s22, 1
      %p35 = por %p33, %p34
      %p36 = scmp.ne.s32.totalorder %s27, %s28
      %p37 = scmp.eq.s32.totalorder %s22, 0
      %p38 = por %p36, %p37
      %p39 = scmp.ne.s32.totalorder %s27, %s28
      %p40 = scmp.eq.s32.totalorder %s23, 1
      %p41 = por %p39, %p40
      %p43 = scmp.ne.s32.totalorder %s28, %s42
      %p44 = scmp.eq.s32.totalorder %s23, 0
      %p45 = por %p43, %p44
      %s47 = sadd.s32 %s46, 1
      %p50 = scmp.eq.s32.totalorder %s17, 1
      %p51 = scmp.ne.s32.totalorder %s46, %s48
      %p52 = scmp.eq.s32.totalorder %s17, 0
      %p53 = por %p51, %p52
      %p54 = scmp.ne.s32.totalorder %s46, %s48
      %p55 = scmp.eq.s32.totalorder %s22, 1
      %p56 = por %p54, %p55
      %p57 = scmp.ne.s32.totalorder %s48, %s49
      %p58 = scmp.eq.s32.totalorder %s22, 0
      %p59 = por %p57, %p58
      %p60 = scmp.ne.s32.totalorder %s48, %s49
      %p61 = scmp.eq.s32.totalorder %s23, 1
      %p62 = por %p60, %p61
      %p64 = scmp.ne.s32.totalorder %s49, %s63
      %p65 = scmp.eq.s32.totalorder %s23, 0
      %p66 = por %p64, %p65
      %s67 = ssub.s32 %s17, %s24
      %p68 = scmp.eq.s32.totalorder %s67, 0
      %s70 = sadd.s32 %s69, 1
      %s71 = scalar_select %p68, %s69, %s70
      %p74 = pneg %p68
      %p75 = scmp.eq.s32.totalorder %s17, 1
      %p76 = por %p74, %p75
      %p77 = scmp.ne.s32.totalorder %s69, %s72
      %p78 = scmp.eq.s32.totalorder %s17, 0
      %p79 = por %p77, %p78
      %p80 = scmp.ne.s32.totalorder %s69, %s72
      %p81 = scmp.eq.s32.totalorder %s22, 1
      %p82 = por %p80, %p81
      %p83 = scmp.ne.s32.totalorder %s72, %s73
      %p84 = scmp.eq.s32.totalorder %s22, 0
      %p85 = por %p83, %p84
      %p86 = scmp.ne.s32.totalorder %s72, %s73
      %p87 = scmp.eq.s32.totalorder %s23, 1
      %p88 = por %p86, %p87
      %p90 = scmp.ne.s32.totalorder %s73, %s89
      %p91 = scmp.eq.s32.totalorder %s23, 0
      %p92 = por %p90, %p91
      %s93 = ssub.s32 %s17, %s24
      %p94 = scmp.eq.s32.totalorder %s93, 0
      %s96 = sadd.s32 %s95, 1
      %s97 = scalar_select %p94, %s95, %s96
      %p100 = pneg %p94
      %p101 = scmp.eq.s32.totalorder %s17, 1
      %p102 = por %p100, %p101
      %p103 = scmp.ne.s32.totalorder %s95, %s98
      %p104 = scmp.eq.s32.totalorder %s17, 0
      %p105 = por %p103, %p104
      %p106 = scmp.ne.s32.totalorder %s95, %s98
      %p107 = scmp.eq.s32.totalorder %s22, 1
      %p108 = por %p106, %p107
      %p109 = scmp.ne.s32.totalorder %s98, %s99
      %p110 = scmp.eq.s32.totalorder %s22, 0
      %p111 = por %p109, %p110
      %p112 = scmp.ne.s32.totalorder %s98, %s99
      %p113 = scmp.eq.s32.totalorder %s23, 1
      %p114 = por %p112, %p113
      %p116 = scmp.ne.s32.totalorder %s99, %s115
      %p117 = scmp.eq.s32.totalorder %s23, 0
      %p118 = por %p116, %p117
      %p119 = scmp.le.s32.totalorder 1, %s17
      %p120 = scmp.lt.s32.totalorder %s17, 3
      %p121 = pnand %p119, %p120
      %p122 = pneg %p121
      // Predicated region
      $region9: #{tpu_custom_call.1} parent=5 // pred_check
        _
      $region10: #{tpu_custom_call.1} parent=5 // pred_check_branch
        %124 = sbr.rel (%p121) target = $region12
      $region11: #{tpu_custom_call.1} parent=5 // pred_region
        %s125 = ssub.s32 %s17, 1
        // Predicated region
        $region13: #{tpu_custom_call.1} parent=11 // pred_check
          %p126 = pneg %p38
        $region14: #{tpu_custom_call.1} parent=11 // pred_check_branch
          %128 = sbr.rel (%p126) target = $region16
        $region15: #{tpu_custom_call.1} parent=11 // pred_region
          %s130 = ssub.s32 64, 64
          %131 = vsyncadd [#allocation5], %s130
          %134 = dma.hbm_to_smem %s0, 64, [#allocation2], [#allocation5]
        $region16: #{tpu_custom_call.1} parent=11 // pred_fallthru
          _
        // Predicated region
        $region17: #{tpu_custom_call.1} parent=11 // pred_check
          %p135 = pneg %p59
        $region18: #{tpu_custom_call.1} parent=11 // pred_check_branch
          %137 = sbr.rel (%p135) target = $region20
        $region19: #{tpu_custom_call.1} parent=11 // pred_region
          %s139 = ssub.s32 16, 16
          %140 = vsyncadd [#allocation6], %s139
          %s142 = sshll.u32 %s1, 4
          %s143 = int_to_ptr.vmem [resolvable:$true] %s142
          %145 = dma.vmem_to_smem %s143, 16, [#allocation7], [#allocation6]
        $region20: #{tpu_custom_call.1} parent=11 // pred_fallthru
          _
      $region12: #{tpu_custom_call.1} parent=5 // pred_fallthru
        _
      %p146 = scmp.lt.s32.totalorder %s17, 2
      // Predicated region
      $region21: #{tpu_custom_call.1} parent=5 // pred_check
        %p147 = pneg %p146
      $region22: #{tpu_custom_call.1} parent=5 // pred_check_branch
        %149 = sbr.rel (%p147) target = $region24
      $region23: #{tpu_custom_call.1} parent=5 // pred_region
        // Predicated region
        $region25: #{tpu_custom_call.1} parent=23 // pred_check
          %p150 = pneg %p79
        $region26: #{tpu_custom_call.1} parent=23 // pred_check_branch
          %152 = sbr.rel (%p150) target = $region28
        $region27: #{tpu_custom_call.1} parent=23 // pred_region
          %s153 = sand.u32 %s69, 1
          %s154 = scalar_lea.sflag [#allocation3], %s153
          %s155 = sand.u32 %s69, 1
          %s156 = smul.addr %s155, 64
          %s157 = scalar_lea.vmem [#allocation8], %s156
          %s159 = ssub.s32 1024, 1024
          %160 = vsyncadd %s154, %s159
          %s161 = smul.addr %s17, 8
          %s162 = smul.addr %s161, 128
          %s163 = scalar_lea.hbm %s2, %s162
          %s164 = sshll.u32 %s157, 4
          %s165 = int_to_ptr.vmem [resolvable:$true] %s164
          %170 = dma.hbm_to_vmem [thread:$0]  %s163, 1024, %s165, %s154, 128, 128, 8
        $region28: #{tpu_custom_call.1} parent=23 // pred_fallthru
          _
      $region24: #{tpu_custom_call.1} parent=5 // pred_fallthru
        _
      %p171 = scmp.le.s32.totalorder 1, %s17
      %p172 = scmp.lt.s32.totalorder %s17, 3
      %p173 = pnand %p171, %p172
      %p174 = pneg %p173
      // Predicated region
      $region29: #{tpu_custom_call.1} parent=5 // pred_check
        _
      $region30: #{tpu_custom_call.1} parent=5 // pred_check_branch
        %176 = sbr.rel (%p173) target = $region32
      $region31: #{tpu_custom_call.1} parent=5 // pred_region
        %s177 = ssub.s32 %s17, 1
        // Predicated region
        $region33: #{tpu_custom_call.1} parent=31 // pred_check
          %p178 = pneg %p38
        $region34: #{tpu_custom_call.1} parent=31 // pred_check_branch
          %180 = sbr.rel (%p178) target = $region36
        $region35: #{tpu_custom_call.1} parent=31 // pred_region
          %181 = dma.done [#allocation5], 64
        $region36: #{tpu_custom_call.1} parent=31 // pred_fallthru
          _
        // Predicated region
        $region37: #{tpu_custom_call.1} parent=31 // pred_check
          %p182 = pneg %p59
        $region38: #{tpu_custom_call.1} parent=31 // pred_check_branch
          %184 = sbr.rel (%p182) target = $region40
        $region39: #{tpu_custom_call.1} parent=31 // pred_region
          %185 = dma.done [#allocation6], 16
        $region40: #{tpu_custom_call.1} parent=31 // pred_fallthru
          _
        %s186 = sand.u32 %s72, 1
        %s187 = scalar_lea.sflag [#allocation3], %s186
        %s188 = sand.u32 %s72, 1
        %s189 = smul.addr %s188, 64
        %s190 = scalar_lea.vmem [#allocation8], %s189
        // Predicated region
        $region41: #{tpu_custom_call.1} parent=31 // pred_check
          %p191 = pneg %p85
        $region42: #{tpu_custom_call.1} parent=31 // pred_check_branch
          %193 = sbr.rel (%p191) target = $region44
        $region43: #{tpu_custom_call.1} parent=31 // pred_region
          %194 = dma.done %s187, 1024
        $region44: #{tpu_custom_call.1} parent=31 // pred_fallthru
          _
        %195 = sfence
        %p196 = pneg %p38
        %p197 = pneg %p35
        %p198 = pneg %p59
        %p199 = pneg %p56
        %s200 = sand.u32 %s72, 1
        %s201 = scalar_lea.sflag [#allocation3], %s200
        %s202 = sand.u32 %s72, 1
        %s203 = smul.addr %s202, 64
        %s204 = scalar_lea.vmem [#allocation8], %s203
        %p205 = pneg %p85
        %p206 = pneg %p82
        %p207 = pneg %p111
        %p208 = pneg %p108
        %s209 = sand.u32 %s98, 1
        %s210 = scalar_lea.sflag [#allocation4], %s209
        %s211 = sand.u32 %s98, 1
        %s212 = smul.addr %s211, 16
        %s213 = scalar_lea.vmem [#allocation9], %s212
        %v214 = vld [vmem:[%s190] sm:$0xff]
        %v215 = vld [vmem:[%s190 + $0x8] sm:$0xff]
        %v216 = vld [vmem:[%s190 + $0x10] sm:$0xff]
        %v217 = vld [vmem:[%s190 + $0x18] sm:$0xff]
        %v218 = vld [vmem:[%s190 + $0x20] sm:$0xff]
        %v219 = vld [vmem:[%s190 + $0x28] sm:$0xff]
        %v220 = vld [vmem:[%s190 + $0x30] sm:$0xff]
        %v221 = vld [vmem:[%s190 + $0x38] sm:$0xff]
        %s222 = sld [smem:[#allocation7]]
        %v223 = vstv %s222
        %s224 = sld [smem:[#allocation7 + $0x1]]
        %v225 = vstv %s224
        %s226 = sld [smem:[#allocation7 + $0x2]]
        %v227 = vstv %s226
        %s228 = sld [smem:[#allocation2]]
        %v229 = vstv %s228
        %v230 = vmul.f32 %v229, %v214
        %v231 = vmul.f32 %v229, %v215
        %v232 = vadd.f32 %v223, %v230
        %v233 = vadd.f32 %v223, %v231
        %s234 = sld [smem:[#allocation2 + $0x80]]
        %v235 = vstv %s234
        %v236 = vmul.f32 %v235, %v214
        %v237 = vmul.f32 %v235, %v215
        %v238 = vadd.f32 %v225, %v236
        %v239 = vadd.f32 %v225, %v237
        %s240 = sld [smem:[#allocation2 + $0x100]]
        %v241 = vstv %s240
        %v242 = vmul.f32 %v241, %v214
        %v243 = vmul.f32 %v241, %v215
        %v244 = vadd.f32 %v227, %v242
        %v245 = vadd.f32 %v227, %v243
        %s246 = sld [smem:[#allocation2 + $0x1]]
        %v247 = vstv %s246
        %v248 = vmul.f32 %v247, %v216
        %v249 = vmul.f32 %v247, %v217
        %v250 = vadd.f32 %v232, %v248
        %v251 = vadd.f32 %v233, %v249
        %s252 = sld [smem:[#allocation2 + $0x81]]
        %v253 = vstv %s252
        %v254 = vmul.f32 %v253, %v216
        %v255 = vmul.f32 %v253, %v217
        %v256 = vadd.f32 %v238, %v254
        %v257 = vadd.f32 %v239, %v255
        %s258 = sld [smem:[#allocation2 + $0x101]]
        %v259 = vstv %s258
        %v260 = vmul.f32 %v259, %v216
        %v261 = vmul.f32 %v259, %v217
        %v262 = vadd.f32 %v244, %v260
        %v263 = vadd.f32 %v245, %v261
        %s264 = sld [smem:[#allocation2 + $0x2]]
        %v265 = vstv %s264
        %v266 = vmul.f32 %v265, %v218
        %v267 = vmul.f32 %v265, %v219
        %v268 = vadd.f32 %v250, %v266
        %v269 = vadd.f32 %v251, %v267
        %s270 = sld [smem:[#allocation2 + $0x82]]
        %v271 = vstv %s270
        %v272 = vmul.f32 %v271, %v218
        %v273 = vmul.f32 %v271, %v219
        %v274 = vadd.f32 %v256, %v272
        %v275 = vadd.f32 %v257, %v273
        %s276 = sld [smem:[#allocation2 + $0x102]]
        %v277 = vstv %s276
        %v278 = vmul.f32 %v277, %v218
        %v279 = vmul.f32 %v277, %v219
        %v280 = vadd.f32 %v262, %v278
        %v281 = vadd.f32 %v263, %v279
        %s282 = sld [smem:[#allocation2 + $0x3]]
        %v283 = vstv %s282
        %v284 = vmul.f32 %v283, %v220
        %v285 = vmul.f32 %v283, %v221
        %v286 = vadd.f32 %v268, %v284
        %v287 = vadd.f32 %v269, %v285
        %s288 = sld [smem:[#allocation2 + $0x83]]
        %v289 = vstv %s288
        %v290 = vmul.f32 %v289, %v220
        %v291 = vmul.f32 %v289, %v221
        %v292 = vadd.f32 %v274, %v290
        %v293 = vadd.f32 %v275, %v291
        %s294 = sld [smem:[#allocation2 + $0x103]]
        %v295 = vstv %s294
        %v296 = vmul.f32 %v295, %v220
        %v297 = vmul.f32 %v295, %v221
        %v298 = vadd.f32 %v280, %v296
        %v299 = vadd.f32 %v281, %v297
        %vm300 = vcmask 130048
        %v302 = vsel %vm300, %v286, 0
        %v305 = vsel %vm300, %v287, 0
        %v308 = vsel %vm300, %v292, 0
        %v311 = vsel %vm300, %v293, 0
        %313 = vmatprep.subr.mxu0 0.0
        %314 = vmatpush1.xpose.msra.mxu0 0.0
        %315 = vmatprep.subr.mxu0 0.0
        %316 = vmatpush1.xpose.msra.mxu0 0.0
        %317 = vmatprep.subr.mxu0 0.0
        %318 = vmatpush1.xpose.msra.mxu0 0.0
        %319 = vmatprep.subr.mxu0 0.0
        %320 = vmatpush1.xpose.msra.mxu0 0.0
        %321 = vmatprep.subr.mxu0 0.0
        %322 = vmatpush1.xpose.msra.mxu0 0.0
        %323 = vmatprep.subr.mxu0 0.0
        %324 = vmatpush1.xpose.msra.mxu0 0.0
        %325 = vmatprep.subr.mxu0 0.0
        %326 = vmatpush1.xpose.msra.mxu0 0.0
        %327 = vmatprep.subr.mxu0 0.0
        %328 = vmatpush1.xpose.msra.mxu0 0.0
        %329 = vmatprep.subr.mxu0 0.0
        %330 = vmatpush1.xpose.msra.mxu0 0.0
        %331 = vmatprep.subr.mxu0 0.0
        %332 = vmatpush1.xpose.msra.mxu0 0.0
        %333 = vmatprep.subr.mxu0 0.0
        %334 = vmatpush1.xpose.msra.mxu0 0.0
        %335 = vmatprep.subr.mxu0 0.0
        %336 = vmatpush1.xpose.msra.mxu0 0.0
        %337 = vmatprep.subr.mxu0 0.0
        %338 = vmatpush1.xpose.msra.mxu0 0.0
        %339 = vmatprep.subr.mxu0 0.0
        %340 = vmatpush1.xpose.msra.mxu0 0.0
        %341 = vmatprep.subr.mxu0 0.0
        %342 = vmatpush1.xpose.msra.mxu0 %v311
        %343 = vmatprep.subr.mxu0 0.0
        %344 = vmatpush1.xpose.msra.mxu0 %v308
        %345 = vmatprep.subr.mxu0 0.0
        %346 = vmatpush2.xpose.msra.mxu0 0.0
        %347 = vmatprep.subr.mxu0 0.0
        %348 = vmatpush2.xpose.msra.mxu0 0.0
        %349 = vmatprep.subr.mxu0 0.0
        %350 = vmatpush2.xpose.msra.mxu0 0.0
        %351 = vmatprep.subr.mxu0 0.0
        %352 = vmatpush2.xpose.msra.mxu0 0.0
        %353 = vmatprep.subr.mxu0 0.0
        %354 = vmatpush2.xpose.msra.mxu0 0.0
        %355 = vmatprep.subr.mxu0 0.0
        %356 = vmatpush2.xpose.msra.mxu0 0.0
        %357 = vmatprep.subr.mxu0 0.0
        %358 = vmatpush2.xpose.msra.mxu0 0.0
        %359 = vmatprep.subr.mxu0 0.0
        %360 = vmatpush2.xpose.msra.mxu0 0.0
        %361 = vmatprep.subr.mxu0 0.0
        %362 = vmatpush2.xpose.msra.mxu0 0.0
        %363 = vmatprep.subr.mxu0 0.0
        %364 = vmatpush2.xpose.msra.mxu0 0.0
        %365 = vmatprep.subr.mxu0 0.0
        %366 = vmatpush2.xpose.msra.mxu0 0.0
        %367 = vmatprep.subr.mxu0 0.0
        %368 = vmatpush2.xpose.msra.mxu0 0.0
        %369 = vmatprep.subr.mxu0 0.0
        %370 = vmatpush2.xpose.msra.mxu0 0.0
        %371 = vmatprep.subr.mxu0 0.0
        %372 = vmatpush2.xpose.msra.mxu0 0.0
        %373 = vmatprep.subr.mxu0 0.0
        %374 = vmatpush2.xpose.msra.mxu0 0.0
        %375 = vmatprep.subr.mxu0 0.0
        %376 = vmatpush2.xpose.msra.mxu0 0.0
        %377 = vmatprep.mubr.f32.mxu0 0.0
        %378 = vmatmul.mubr.f32.gmra.mxu0 %v302
        %v379 = vpop.f32.mrf.mxu0
        %v380 = vadd.f32 0.0, %v379
        %v381 = vpop.f32.mrf.mxu0
        %382 = vmatprep.mubr.f32.mxu0 0.0
        %383 = vmatmul.mubr.f32.gmra.mxu0 %v305
        %v384 = vpop.f32.mrf.mxu0
        %v385 = vadd.f32 0.0, %v384
        %v386 = vpop.f32.mrf.mxu0
        %387 = vdwg.mxu0
        %v388 = vsel %vm300, %v380, -inf
        %389 = vmax.xlane.f32.xlu0 %v388
        %v390 = vpop.xlane.xlu0 %389
        %v391 = vsel %vm300, %v385, -inf
        %392 = vmax.xlane.f32.xlu0 %v391
        %v393 = vpop.xlane.xlu0 %392
        %v394 = vsub.f32 %v380, %v390
        %v395 = vsub.f32 %v385, %v393
        %v396 = vmul.f32 %v394, 1.442695
        %v397 = vpow.pop %v396
        %v398 = vmul.f32 %v395, 1.442695
        %v399 = vpow.pop %v398
        %v400 = vsel %vm300, %v397, 0.0
        %401 = vadd.xlane.f32.xlu0 %v400
        %v402 = vpop.xlane.xlu0 %401
        %v403 = vsel %vm300, %v399, 0.0
        %404 = vadd.xlane.f32.xlu0 %v403
        %v405 = vpop.xlane.xlu0 %404
        %v406 = vrcp.pop %v402
        %v407 = vmul.f32 %v397, %v406
        %v408 = vrcp.pop %v405
        %v409 = vmul.f32 %v399, %v408
        %v411 = vsel %vm300, %v407, 0
        %v414 = vsel %vm300, %v409, 0
        %416 = vmatprep.subr.mxu0 0.0
        %417 = vmatpush1.msra.mxu0 0.0
        %418 = vmatprep.subr.mxu0 0.0
        %419 = vmatpush1.msra.mxu0 0.0
        %420 = vmatprep.subr.mxu0 0.0
        %421 = vmatpush1.msra.mxu0 0.0
        %422 = vmatprep.subr.mxu0 0.0
        %423 = vmatpush1.msra.mxu0 0.0
        %424 = vmatprep.subr.mxu0 0.0
        %425 = vmatpush1.msra.mxu0 0.0
        %426 = vmatprep.subr.mxu0 0.0
        %427 = vmatpush1.msra.mxu0 0.0
        %428 = vmatprep.subr.mxu0 0.0
        %429 = vmatpush1.msra.mxu0 0.0
        %430 = vmatprep.subr.mxu0 0.0
        %431 = vmatpush1.msra.mxu0 0.0
        %432 = vmatprep.subr.mxu0 0.0
        %433 = vmatpush1.msra.mxu0 0.0
        %434 = vmatprep.subr.mxu0 0.0
        %435 = vmatpush1.msra.mxu0 0.0
        %436 = vmatprep.subr.mxu0 0.0
        %437 = vmatpush1.msra.mxu0 0.0
        %438 = vmatprep.subr.mxu0 0.0
        %439 = vmatpush1.msra.mxu0 0.0
        %440 = vmatprep.subr.mxu0 0.0
        %441 = vmatpush1.msra.mxu0 0.0
        %442 = vmatprep.subr.mxu0 0.0
        %443 = vmatpush1.msra.mxu0 0.0
        %444 = vmatprep.subr.mxu0 0.0
        %445 = vmatpush1.msra.mxu0 %v299
        %446 = vmatprep.subr.mxu0 0.0
        %447 = vmatpush1.msra.mxu0 %v298
        %448 = vmatprep.subr.mxu0 0.0
        %449 = vmatpush2.msra.mxu0 0.0
        %450 = vmatprep.subr.mxu0 0.0
        %451 = vmatpush2.msra.mxu0 0.0
        %452 = vmatprep.subr.mxu0 0.0
        %453 = vmatpush2.msra.mxu0 0.0
        %454 = vmatprep.subr.mxu0 0.0
        %455 = vmatpush2.msra.mxu0 0.0
        %456 = vmatprep.subr.mxu0 0.0
        %457 = vmatpush2.msra.mxu0 0.0
        %458 = vmatprep.subr.mxu0 0.0
        %459 = vmatpush2.msra.mxu0 0.0
        %460 = vmatprep.subr.mxu0 0.0
        %461 = vmatpush2.msra.mxu0 0.0
        %462 = vmatprep.subr.mxu0 0.0
        %463 = vmatpush2.msra.mxu0 0.0
        %464 = vmatprep.subr.mxu0 0.0
        %465 = vmatpush2.msra.mxu0 0.0
        %466 = vmatprep.subr.mxu0 0.0
        %467 = vmatpush2.msra.mxu0 0.0
        %468 = vmatprep.subr.mxu0 0.0
        %469 = vmatpush2.msra.mxu0 0.0
        %470 = vmatprep.subr.mxu0 0.0
        %471 = vmatpush2.msra.mxu0 0.0
        %472 = vmatprep.subr.mxu0 0.0
        %473 = vmatpush2.msra.mxu0 0.0
        %474 = vmatprep.subr.mxu0 0.0
        %475 = vmatpush2.msra.mxu0 0.0
        %476 = vmatprep.subr.mxu0 0.0
        %477 = vmatpush2.msra.mxu0 0.0
        %478 = vmatprep.subr.mxu0 0.0
        %479 = vmatpush2.msra.mxu0 0.0
        %480 = vmatprep.mubr.f32.mxu0 0.0
        %481 = vmatmul.mubr.f32.gmra.mxu0 %v411
        %v482 = vpop.f32.mrf.mxu0
        %v483 = vadd.f32 0.0, %v482
        %v484 = vpop.f32.mrf.mxu0
        %485 = vmatprep.mubr.f32.mxu0 0.0
        %486 = vmatmul.mubr.f32.gmra.mxu0 %v414
        %v487 = vpop.f32.mrf.mxu0
        %v488 = vadd.f32 0.0, %v487
        %v489 = vpop.f32.mrf.mxu0
        %490 = vdwg.mxu0
        %491 = vst.msk [vmem:[%s213] sm:$0xff] %vm300, %v483
        %492 = vst.msk [vmem:[%s213 + $0x8] sm:$0xff] %vm300, %v488
        %s493 = sand.u32 %s98, 1
        %s494 = scalar_lea.sflag [#allocation4], %s493
        %s495 = sand.u32 %s98, 1
        %s496 = smul.addr %s495, 16
        %s497 = scalar_lea.vmem [#allocation9], %s496
        // Predicated region
        $region45: #{tpu_custom_call.1} parent=31 // pred_check
          %p498 = pneg %p108
        $region46: #{tpu_custom_call.1} parent=31 // pred_check_branch
          %500 = sbr.rel (%p498) target = $region48
        $region47: #{tpu_custom_call.1} parent=31 // pred_region
          %s502 = ssub.s32 256, 256
          %503 = vsyncadd %s494, %s502
          %s504 = smul.addr %s22, 2
          %s505 = smul.addr %s504, 128
          %s506 = scalar_lea.hbm %s3, %s505
          %s507 = sshll.u32 %s497, 4
          %s508 = int_to_ptr.vmem [resolvable:$true] %s507
          %513 = dma.vmem_to_hbm [thread:$0]  %s508, 256, %s506, %s494, 128, 128, 8
        $region48: #{tpu_custom_call.1} parent=31 // pred_fallthru
          _
      $region32: #{tpu_custom_call.1} parent=5 // pred_fallthru
        _
      %p514 = scmp.le.s32.totalorder 2, %s17
      // Predicated region
      $region49: #{tpu_custom_call.1} parent=5 // pred_check
        %p515 = pneg %p514
      $region50: #{tpu_custom_call.1} parent=5 // pred_check_branch
        %517 = sbr.rel (%p515) target = $region52
      $region51: #{tpu_custom_call.1} parent=5 // pred_region
        %s518 = ssub.s32 %s17, 2
        // Predicated region
        $region53: #{tpu_custom_call.1} parent=51 // pred_check
          %p519 = pneg %p114
        $region54: #{tpu_custom_call.1} parent=51 // pred_check_branch
          %521 = sbr.rel (%p519) target = $region56
        $region55: #{tpu_custom_call.1} parent=51 // pred_region
          %s522 = sand.u32 %s99, 1
          %s523 = scalar_lea.sflag [#allocation4], %s522
          %s524 = sand.u32 %s99, 1
          %s525 = smul.addr %s524, 16
          %s526 = scalar_lea.vmem [#allocation9], %s525
          %527 = dma.done %s523, 256
        $region56: #{tpu_custom_call.1} parent=51 // pred_fallthru
          _
      $region52: #{tpu_custom_call.1} parent=5 // pred_fallthru
        _
    $region6: #{tpu_custom_call.1} parent=1 // loop_footer
      %s21 = sadd.s32 1, %s17
    $region7: #{tpu_custom_call.1} parent=1 // loop_footer_branch
      %16 = sbr.rel target = $region3
    $region8: #{tpu_custom_call.1} parent=1 // loop_exit
      _
    %528 = vsyncpa [#allocation3], 1
    %s529 = scalar_lea.sflag [#allocation3], 1
    %530 = vsyncpa %s529, 1
    %531 = vsyncpa [#allocation4], 1
    %s532 = scalar_lea.sflag [#allocation4], 1
    %533 = vsyncpa %s532, 1
    %534 = vsyncpa [#allocation5], 1
    %s535 = scalar_lea.sflag [#allocation5], 1
    %536 = vsyncpa %s535, 1
    %537 = vsyncpa [#allocation6], 1
    %s538 = scalar_lea.sflag [#allocation6], 1
    %539 = vsyncpa %s538, 1

</llo_original>
